<compile_context>
chip_gen: v7x
topology: tpu7x:2x2x1
jax: 0.10.0
libtpu: 0.0.40
codegen_flags: <defaults>
</compile_context>

<pallas_src>
import functools

import jax
import jax.numpy as jnp
from jax import lax
from jax.experimental import pallas as pl
from jax.experimental.pallas import tpu as pltpu


# ----------------------------- fused kernel -------------------------------- #

def _conv3x3_banded(x_bf, w_ref, not_top, not_bot):
    """3x3 SAME conv on a lane-dense (M, W*Cin) slab via 3 banded matmuls.

    x_bf   : (M, W*Cin) bf16, rows are (image, h) in row-major order.
    w_ref  : (3, W*Cin, W*Cout) bf16 ref, one banded matrix per kh tap
             (horizontal SAME padding + BN scale already baked in).
    not_top: (M, W*Cout) bool, False on the first row of each image.
    not_bot: (M, W*Cout) bool, False on the last row of each image.
    """
    M = x_bf.shape[0]
    b0 = jnp.dot(x_bf, w_ref[0], preferred_element_type=jnp.float32)
    b1 = jnp.dot(x_bf, w_ref[1], preferred_element_type=jnp.float32)
    b2 = jnp.dot(x_bf, w_ref[2], preferred_element_type=jnp.float32)
    # out[h] = x[h-1]@W0 + x[h]@W1 + x[h+1]@W2 ; realign partial sums on the XLU
    # (rolls wrap across images inside the slab; masks zero exactly those rows).
    a0 = jnp.where(not_top, pltpu.roll(b0, 1, axis=0), 0.0)        # b0[h-1]
    a2 = jnp.where(not_bot, pltpu.roll(b2, M - 1, axis=0), 0.0)    # b2[h+1]
    return b1 + a0 + a2


def _basic_block_kernel(x_ref, m1_ref, b1_ref, m2_ref, b2_ref, o_ref, *, H):
    """conv3x3+bn1+relu -> conv3x3+bn2 -> +identity -> relu, one image group.

    x_ref : (M, W*Cin) bf16 lane-dense activations, M = images_per_step * H
    m1_ref: (3, W*Cin, W*Cmid) bf16 banded weights (bn1 scale folded)
    b1_ref: (1, W*Cmid) f32 bias tiled over w
    m2_ref: (3, W*Cmid, W*Cout) bf16 banded weights (bn2 scale folded)
    b2_ref: (1, W*Cout) f32 bias tiled over w
    o_ref : (M, W*Cout) f32
    """
    M, L = x_ref.shape
    row = lax.rem(lax.broadcasted_iota(jnp.int32, (M, L), 0), H)   # row within image
    not_top = row != 0
    not_bot = row != (H - 1)

    x_bf = x_ref[...]                                              # (M, W*Cin) bf16

    # ---- conv1 + bn1 (scale folded into m1) + relu --------------------------
    y = jnp.maximum(
        _conv3x3_banded(x_bf, m1_ref, not_top, not_bot) + b1_ref[...], 0.0)

    # ---- conv2 + bn2 + identity + relu ---------------------------------------
    acc = _conv3x3_banded(y.astype(jnp.bfloat16), m2_ref, not_top, not_bot)
    out = acc + b2_ref[...] + x_ref[...].astype(jnp.float32)       # re-read identity
    o_ref[...] = jnp.maximum(out, 0.0).astype(o_ref.dtype)


# ------------------------------- wrapper ------------------------------------ #

def basic_block_forward(x_nchw, packed):
    """BasicBlock forward (stride=1, downsample=None). Input/output are NCHW."""
    N, C, H, W = x_nchw.shape
    m1, b1, m2, b2 = packed["m1"], packed["b1"], packed["m2"], packed["b2"]
    L = m1.shape[1]
    assert m1.shape[2] == L and m2.shape[1] == L and m2.shape[2] == L, \
        "stride=1 / downsample=None requires Cin == Cmid == Cout"
    assert L == W * C

    # NCHW -> NHWC -> lane-dense (N*H, W*C) bf16 slab (batch folded into M).
    # TODO(synk): in production keep activations NHWC/lane-dense end-to-end and
    # drop these transposes (each is a separate HBM-bound XLA op).
    x = jnp.transpose(x_nchw, (0, 2, 3, 1)).reshape(N * H, W * C)
    x_bf = x.astype(jnp.bfloat16)

    # Images per grid step: whole images per step (so the roll/mask halo stays
    # intra-step) with enough rows to keep the MXU M-dim busy.
    nb = max(1, min(N, max(1, 256 // H)))
    while N % nb:
        nb -= 1
    M = nb * H
    grid = (N // nb,)

    # Flops actually executed by the banded formulation: 3 dots of (N*H, L)x(L, L)
    # per conv, 2 convs.
    flops = int(2 * (N * H) * L * L * 3 * 2)
    bytes_accessed = int(x_bf.size * 2 + (m1.size + m2.size) * 2
                         + (b1.size + b2.size) * 4 + N * H * L * 4)

    kernel = functools.partial(_basic_block_kernel, H=H)
    out = pl.pallas_call(
        kernel,
        out_shape=jax.ShapeDtypeStruct((N * H, L), jnp.float32),
        grid_spec=pltpu.PrefetchScalarGridSpec(
            num_scalar_prefetch=0,
            grid=grid,
            in_specs=[
                pl.BlockSpec((M, L), lambda g: (g, 0)),
                pl.BlockSpec((3, L, L), lambda g: (0, 0, 0)),
                pl.BlockSpec((1, L), lambda g: (0, 0)),
                pl.BlockSpec((3, L, L), lambda g: (0, 0, 0)),
                pl.BlockSpec((1, L), lambda g: (0, 0)),
            ],
            out_specs=pl.BlockSpec((M, L), lambda g: (g, 0)),
        ),
        compiler_params=pltpu.CompilerParams(
            dimension_semantics=("parallel",)),
        cost_estimate=pl.CostEstimate(flops=flops, transcendentals=0,
                                      bytes_accessed=bytes_accessed),
    )(x_bf, m1, b1, m2, b2)
    # TODO(synk): for real ResNet spatial sizes, single-buffer the grid-invariant
    # weights (pl.Buffered(1) / one-shot DMA into scratch) and replace the banded
    # Toeplitz weights (O(W^2*Cin*Cout), mostly structural zeros at W=56) with
    # conv-as-matmul over row bands + 2-row halo sized for per-chip scoped VMEM
    # (16 MiB v5e, 32 MiB v6e/v7x defaults).
    return jnp.transpose(out.reshape(N, H, W, C), (0, 3, 1, 2))


# --------------------------- parameter setup -------------------------------- #

def _fold_bn(gamma, beta, mean, var, eps=1e-5):
    scale = gamma / jnp.sqrt(var + eps)
    bias = beta - mean * scale
    return scale.astype(jnp.float32), bias.astype(jnp.float32)


def make_params(key, inplanes, planes):
    """Raw parameters: conv weights in HWIO layout + folded BN scale/bias."""
    k1, k2 = jax.random.split(key)
    w1 = (jax.random.normal(k1, (3, 3, inplanes, planes), jnp.float32)
          * (2.0 / (9 * inplanes)) ** 0.5)
    w2 = (jax.random.normal(k2, (3, 3, planes, planes), jnp.float32)
          * (2.0 / (9 * planes)) ** 0.5)
    c = jnp.arange(planes, dtype=jnp.float32)
    g1, b1, m1, v1 = 1.0 + 0.1 * jnp.sin(c), 0.05 * c, 0.01 * c, 1.0 + 0.02 * c
    g2, b2, m2, v2 = 1.0 - 0.05 * jnp.cos(c), -0.03 * c, 0.02 * c, 1.0 + 0.01 * c
    s1, bi1 = _fold_bn(g1, b1, m1, v1)
    s2, bi2 = _fold_bn(g2, b2, m2, v2)
    return {"w1": w1, "scale1": s1, "bias1": bi1,
            "w2": w2, "scale2": s2, "bias2": bi2}


def _banded_weights(w_hwio, scale, W):
    """(3,3,Cin,Cout) HWIO conv weight (+ per-Cout BN scale) -> (3, W*Cin, W*Cout)
    bf16 banded matrices encoding the kw taps with SAME horizontal padding."""
    w = (w_hwio * scale).astype(jnp.float32)      # fold BN scale into the weights
    mats = []
    for kh in range(3):
        m = jnp.zeros((W * w.shape[2], W * w.shape[3]), jnp.float32)
        for kw in range(3):
            # sel[ws, wo] = 1 iff source column ws == output column wo + (kw - 1)
            sel = jnp.eye(W, k=1 - kw, dtype=jnp.float32)
            m = m + jnp.kron(sel, w[kh, kw])
        mats.append(m)
    return jnp.stack(mats, axis=0).astype(jnp.bfloat16)


def pack_params(raw, W):
    """Pack raw params into the lane-dense fused-kernel layout."""
    return {
        "m1": _banded_weights(raw["w1"], raw["scale1"], W),
        "b1": jnp.tile(raw["bias1"], W)[None, :].astype(jnp.float32),
        "m2": _banded_weights(raw["w2"], raw["scale2"], W),
        "b2": jnp.tile(raw["bias2"], W)[None, :].astype(jnp.float32),
    }


# ------------------------------- reference ---------------------------------- #

def _reference(x_nchw, raw):
    x = jnp.transpose(x_nchw, (0, 2, 3, 1))
    dn = lax.conv_dimension_numbers(x.shape, raw["w1"].shape, ("NHWC", "HWIO", "NHWC"))
    y = lax.conv_general_dilated(x, raw["w1"], (1, 1), "SAME", dimension_numbers=dn)
    y = jnp.maximum(y * raw["scale1"] + raw["bias1"], 0.0)
    y = lax.conv_general_dilated(y, raw["w2"], (1, 1), "SAME", dimension_numbers=dn)
    y = y * raw["scale2"] + raw["bias2"]
    y = jnp.maximum(y + x, 0.0)
    return jnp.transpose(y, (0, 3, 1, 2))


# --------------------------------- main -------------------------------------- #

if __name__ == "__main__":
    # TODO(synk): stride>1 path (anti-aliased blur-pool Downsample) and the
    # downsample identity branch are not implemented; module defaults are
    # stride=1, downsample=None.
    N, C, H, W = 2, 8, 16, 16            # W*C = 128 -> fully lane-dense
    key = jax.random.PRNGKey(0)
    kx, kp = jax.random.split(key)
    x = jax.random.normal(kx, (N, C, H, W), jnp.float32)
    raw = make_params(kp, C, C)
    packed = pack_params(raw, W)

    out = jax.block_until_ready(basic_block_forward(x, packed))

    ref = _reference(x, raw)                       # fp32 reference (true module math)
    assert out.shape == (N, C, H, W)
    max_err = float(jnp.max(jnp.abs(out - ref)))
    # bf16 activations/weights with fp32 accumulation -> relaxed tolerance.
    assert jnp.allclose(out, ref, atol=5e-2, rtol=5e-2), \
        f"mismatch vs reference (max abs err {max_err})"
    print("KERNEL_OK")
</pallas_src>

<mosaic_0001>
module attributes {stable_mosaic.version = 11 : i64} {
  func.func @_basic_block_kernel(%arg0: i32, %arg1: memref<32x128xbf16, #tpu.memory_space<vmem>>, %arg2: memref<3x128x128xbf16, #tpu.memory_space<vmem>>, %arg3: memref<1x128xf32, #tpu.memory_space<vmem>>, %arg4: memref<3x128x128xbf16, #tpu.memory_space<vmem>>, %arg5: memref<1x128xf32, #tpu.memory_space<vmem>>, %arg6: memref<32x128xf32, #tpu.memory_space<vmem>>) attributes {dimension_semantics = [#tpu.dimension_semantics<parallel>], iteration_bounds = array<i64: 1>, scalar_prefetch = 0 : i64, scratch_operands = 0 : i64, tpu.core_type = #tpu.core_type<tc>, window_params = [{transform_indices = @transform_0, window_bounds = array<i64: 32, 128>}, {pipeline_mode = #tpu.pipeline_mode<synchronous>, transform_indices = @transform_1, window_bounds = array<i64: 3, 128, 128>}, {pipeline_mode = #tpu.pipeline_mode<synchronous>, transform_indices = @transform_2, window_bounds = array<i64: 1, 128>}, {pipeline_mode = #tpu.pipeline_mode<synchronous>, transform_indices = @transform_3, window_bounds = array<i64: 3, 128, 128>}, {pipeline_mode = #tpu.pipeline_mode<synchronous>, transform_indices = @transform_4, window_bounds = array<i64: 1, 128>}, {transform_indices = @transform_5, window_bounds = array<i64: 32, 128>}]} {
    %0 = tpu.iota {dimensions = array<i32: 0>} : vector<32x128xi32>
    %c16_i32 = arith.constant 16 : i32
    %1 = vector.broadcast %c16_i32 : i32 to vector<32x128xi32>
    %2 = arith.remsi %0, %1 : vector<32x128xi32>
    %c0_i32 = arith.constant 0 : i32
    %3 = vector.broadcast %c0_i32 : i32 to vector<32x128xi32>
    %4 = arith.cmpi ne, %2, %3 : vector<32x128xi32>
    %c15_i32 = arith.constant 15 : i32
    %5 = vector.broadcast %c15_i32 : i32 to vector<32x128xi32>
    %6 = arith.cmpi ne, %2, %5 : vector<32x128xi32>
    %c0 = arith.constant 0 : index
    %c0_0 = arith.constant 0 : index
    %7 = vector.load %arg1[%c0, %c0_0] : memref<32x128xbf16, #tpu.memory_space<vmem>>, vector<32x128xbf16>
    %c0_1 = arith.constant 0 : index
    %c0_2 = arith.constant 0 : index
    %c0_3 = arith.constant 0 : index
    %8 = vector.load %arg2[%c0_1, %c0_2, %c0_3] : memref<3x128x128xbf16, #tpu.memory_space<vmem>>, vector<1x128x128xbf16>
    %9 = vector.shape_cast %8 : vector<1x128x128xbf16> to vector<128x128xbf16>
    %cst = arith.constant dense<0.000000e+00> : vector<32x128xf32>
    %10 = tpu.matmul %7, %9, %cst {dimension_numbers = #tpu.dot_dimension_numbers<[1], [0], [0], [1], [0, 0, 1, 1], [], []>} : vector<32x128xbf16>, vector<128x128xbf16>, vector<32x128xf32> -> vector<32x128xf32>
    %c1 = arith.constant 1 : index
    %c0_4 = arith.constant 0 : index
    %c0_5 = arith.constant 0 : index
    %11 = vector.load %arg2[%c1, %c0_4, %c0_5] : memref<3x128x128xbf16, #tpu.memory_space<vmem>>, vector<1x128x128xbf16>
    %12 = vector.shape_cast %11 : vector<1x128x128xbf16> to vector<128x128xbf16>
    %cst_6 = arith.constant dense<0.000000e+00> : vector<32x128xf32>
    %13 = tpu.matmul %7, %12, %cst_6 {dimension_numbers = #tpu.dot_dimension_numbers<[1], [0], [0], [1], [0, 0, 1, 1], [], []>} : vector<32x128xbf16>, vector<128x128xbf16>, vector<32x128xf32> -> vector<32x128xf32>
    %c2 = arith.constant 2 : index
    %c0_7 = arith.constant 0 : index
    %c0_8 = arith.constant 0 : index
    %14 = vector.load %arg2[%c2, %c0_7, %c0_8] : memref<3x128x128xbf16, #tpu.memory_space<vmem>>, vector<1x128x128xbf16>
    %15 = vector.shape_cast %14 : vector<1x128x128xbf16> to vector<128x128xbf16>
    %cst_9 = arith.constant dense<0.000000e+00> : vector<32x128xf32>
    %16 = tpu.matmul %7, %15, %cst_9 {dimension_numbers = #tpu.dot_dimension_numbers<[1], [0], [0], [1], [0, 0, 1, 1], [], []>} : vector<32x128xbf16>, vector<128x128xbf16>, vector<32x128xf32> -> vector<32x128xf32>
    %c1_i32 = arith.constant 1 : i32
    %17 = tpu.dynamic_rotate %10 by %c1_i32 dim 0 : vector<32x128xf32>, i32 -> vector<32x128xf32>
    %cst_10 = arith.constant 0.000000e+00 : f32
    %18 = vector.broadcast %cst_10 : f32 to vector<32x128xf32>
    %19 = arith.select %4, %17, %18 : vector<32x128xi1>, vector<32x128xf32>
    %c31_i32 = arith.constant 31 : i32
    %20 = tpu.dynamic_rotate %16 by %c31_i32 dim 0 : vector<32x128xf32>, i32 -> vector<32x128xf32>
    %cst_11 = arith.constant 0.000000e+00 : f32
    %21 = vector.broadcast %cst_11 : f32 to vector<32x128xf32>
    %22 = arith.select %6, %20, %21 : vector<32x128xi1>, vector<32x128xf32>
    %23 = arith.addf %13, %19 : vector<32x128xf32>
    %24 = arith.addf %23, %22 : vector<32x128xf32>
    %c0_12 = arith.constant 0 : index
    %c0_13 = arith.constant 0 : index
    %25 = vector.load %arg3[%c0_12, %c0_13] : memref<1x128xf32, #tpu.memory_space<vmem>>, vector<1x128xf32>
    %26 = vector.broadcast %25 : vector<1x128xf32> to vector<32x128xf32>
    %27 = arith.addf %24, %26 : vector<32x128xf32>
    %cst_14 = arith.constant 0.000000e+00 : f32
    %28 = vector.broadcast %cst_14 : f32 to vector<32x128xf32>
    %29 = arith.maximumf %27, %28 : vector<32x128xf32>
    %30 = arith.truncf %29 : vector<32x128xf32> to vector<32x128xbf16>
    %c0_15 = arith.constant 0 : index
    %c0_16 = arith.constant 0 : index
    %c0_17 = arith.constant 0 : index
    %31 = vector.load %arg4[%c0_15, %c0_16, %c0_17] : memref<3x128x128xbf16, #tpu.memory_space<vmem>>, vector<1x128x128xbf16>
    %32 = vector.shape_cast %31 : vector<1x128x128xbf16> to vector<128x128xbf16>
    %cst_18 = arith.constant dense<0.000000e+00> : vector<32x128xf32>
    %33 = tpu.matmul %30, %32, %cst_18 {dimension_numbers = #tpu.dot_dimension_numbers<[1], [0], [0], [1], [0, 0, 1, 1], [], []>} : vector<32x128xbf16>, vector<128x128xbf16>, vector<32x128xf32> -> vector<32x128xf32>
    %c1_19 = arith.constant 1 : index
    %c0_20 = arith.constant 0 : index
    %c0_21 = arith.constant 0 : index
    %34 = vector.load %arg4[%c1_19, %c0_20, %c0_21] : memref<3x128x128xbf16, #tpu.memory_space<vmem>>, vector<1x128x128xbf16>
    %35 = vector.shape_cast %34 : vector<1x128x128xbf16> to vector<128x128xbf16>
    %cst_22 = arith.constant dense<0.000000e+00> : vector<32x128xf32>
    %36 = tpu.matmul %30, %35, %cst_22 {dimension_numbers = #tpu.dot_dimension_numbers<[1], [0], [0], [1], [0, 0, 1, 1], [], []>} : vector<32x128xbf16>, vector<128x128xbf16>, vector<32x128xf32> -> vector<32x128xf32>
    %c2_23 = arith.constant 2 : index
    %c0_24 = arith.constant 0 : index
    %c0_25 = arith.constant 0 : index
    %37 = vector.load %arg4[%c2_23, %c0_24, %c0_25] : memref<3x128x128xbf16, #tpu.memory_space<vmem>>, vector<1x128x128xbf16>
    %38 = vector.shape_cast %37 : vector<1x128x128xbf16> to vector<128x128xbf16>
    %cst_26 = arith.constant dense<0.000000e+00> : vector<32x128xf32>
    %39 = tpu.matmul %30, %38, %cst_26 {dimension_numbers = #tpu.dot_dimension_numbers<[1], [0], [0], [1], [0, 0, 1, 1], [], []>} : vector<32x128xbf16>, vector<128x128xbf16>, vector<32x128xf32> -> vector<32x128xf32>
    %c1_i32_27 = arith.constant 1 : i32
    %40 = tpu.dynamic_rotate %33 by %c1_i32_27 dim 0 : vector<32x128xf32>, i32 -> vector<32x128xf32>
    %cst_28 = arith.constant 0.000000e+00 : f32
    %41 = vector.broadcast %cst_28 : f32 to vector<32x128xf32>
    %42 = arith.select %4, %40, %41 : vector<32x128xi1>, vector<32x128xf32>
    %c31_i32_29 = arith.constant 31 : i32
    %43 = tpu.dynamic_rotate %39 by %c31_i32_29 dim 0 : vector<32x128xf32>, i32 -> vector<32x128xf32>
    %cst_30 = arith.constant 0.000000e+00 : f32
    %44 = vector.broadcast %cst_30 : f32 to vector<32x128xf32>
    %45 = arith.select %6, %43, %44 : vector<32x128xi1>, vector<32x128xf32>
    %46 = arith.addf %36, %42 : vector<32x128xf32>
    %47 = arith.addf %46, %45 : vector<32x128xf32>
    %c0_31 = arith.constant 0 : index
    %c0_32 = arith.constant 0 : index
    %48 = vector.load %arg5[%c0_31, %c0_32] : memref<1x128xf32, #tpu.memory_space<vmem>>, vector<1x128xf32>
    %49 = vector.broadcast %48 : vector<1x128xf32> to vector<32x128xf32>
    %50 = arith.addf %47, %49 : vector<32x128xf32>
    %c0_33 = arith.constant 0 : index
    %c0_34 = arith.constant 0 : index
    %51 = vector.load %arg1[%c0_33, %c0_34] : memref<32x128xbf16, #tpu.memory_space<vmem>>, vector<32x128xbf16>
    %52 = arith.extf %51 : vector<32x128xbf16> to vector<32x128xf32>
    %53 = arith.addf %50, %52 : vector<32x128xf32>
    %cst_35 = arith.constant 0.000000e+00 : f32
    %54 = vector.broadcast %cst_35 : f32 to vector<32x128xf32>
    %55 = arith.maximumf %53, %54 : vector<32x128xf32>
    %c0_36 = arith.constant 0 : index
    %c0_37 = arith.constant 0 : index
    %56 = vector.load %arg6[%c0_36, %c0_37] : memref<32x128xf32, #tpu.memory_space<vmem>>, vector<32x128xf32>
    tpu.vector_store %arg6[%c0_36, %c0_37], %55 {strides = array<i32>} : memref<32x128xf32, #tpu.memory_space<vmem>>, vector<32x128xf32>,
    return
  }
  func.func @transform_0(%arg0: i32) -> (i32, i32) {
    %c0_i32 = arith.constant 0 : i32
    %c0_i32_0 = arith.constant 0 : i32
    return %arg0, %c0_i32 : i32, i32
  }
  func.func @transform_1(%arg0: i32) -> (i32, i32, i32) {
    %c0_i32 = arith.constant 0 : i32
    %c0_i32_0 = arith.constant 0 : i32
    %c0_i32_1 = arith.constant 0 : i32
    %c0_i32_2 = arith.constant 0 : i32
    return %c0_i32, %c0_i32_0, %c0_i32_1 : i32, i32, i32
  }
  func.func @transform_2(%arg0: i32) -> (i32, i32) {
    %c0_i32 = arith.constant 0 : i32
    %c0_i32_0 = arith.constant 0 : i32
    %c0_i32_1 = arith.constant 0 : i32
    return %c0_i32, %c0_i32_0 : i32, i32
  }
  func.func @transform_3(%arg0: i32) -> (i32, i32, i32) {
    %c0_i32 = arith.constant 0 : i32
    %c0_i32_0 = arith.constant 0 : i32
    %c0_i32_1 = arith.constant 0 : i32
    %c0_i32_2 = arith.constant 0 : i32
    return %c0_i32, %c0_i32_0, %c0_i32_1 : i32, i32, i32
  }
  func.func @transform_4(%arg0: i32) -> (i32, i32) {
    %c0_i32 = arith.constant 0 : i32
    %c0_i32_0 = arith.constant 0 : i32
    %c0_i32_1 = arith.constant 0 : i32
    return %c0_i32, %c0_i32_0 : i32, i32
  }
  func.func @transform_5(%arg0: i32) -> (i32, i32) {
    %c0_i32 = arith.constant 0 : i32
    %c0_i32_0 = arith.constant 0 : i32
    return %arg0, %c0_i32 : i32, i32
  }
}

</mosaic_0001>

<llo_original>
// kernel: tpu_custom_call.1
$region0: #{tpu_custom_call.1}
  #allocation0 [shape = 'u32[]', space=smem, size = 0x4, offset = 0x4, fixed_abs, tag = 'smem constant byte address 0x4 - core index']
  #allocation1 [shape = 'u32[144,128]{1,0:T(1,128)}', space=vmem, size = 0x12000, scoped, tag = 'internal scratch']
  %s0 = inlined_call_operand.hbm [shape: bf16[32,128], index: 0, kind: input, shape index: {}]
  %s1 = inlined_call_operand.hbm [shape: bf16[3,128,128], index: 1, kind: input, shape index: {}]
  %s2 = inlined_call_operand.vmem [shape: f32[1,128], index: 2, kind: input, shape index: {}]
  %s3 = inlined_call_operand.hbm [shape: bf16[3,128,128], index: 3, kind: input, shape index: {}]
  %s4 = inlined_call_operand.vmem [shape: f32[1,128], index: 4, kind: input, shape index: {}]
  %s5 = inlined_call_operand.hbm [shape: f32[32,128], index: 5, kind: output, shape index: {}]
  %s6 = sld [smem:[#allocation0]]
  $region42: #{tpu_custom_call.1} parent=0
    _
  %s8 = ssub.s32 1, %s6
  %s9 = scalar_select 0, %s8, %s6
  $region1: #{tpu_custom_call.1} parent=0
    #allocation2 [shape = 'u8[8192]{0}', space=vmem, size = 0x2000, scoped, tag = 'input window, operand 0, single buffered']
    #allocation3 [shape = 's32[1]{0}', space=sflag, size = 0x4, scoped, tag = 'scoped memory for tpu_custom_call.1']
    #allocation4 [shape = 's32[1]{0}', space=sflag, size = 0x4, scoped, tag = 'scoped memory for tpu_custom_call.1']
    #allocation5 [shape = 'u8[98304]{0}', space=vmem, size = 0x18000, scoped, tag = 'input window, operand 1, single buffered']
    #allocation6 [shape = 's32[1]{0}', space=sflag, size = 0x4, scoped, tag = 'scoped memory for tpu_custom_call.1']
    #allocation7 [shape = 'u8[98304]{0}', space=vmem, size = 0x18000, scoped, tag = 'input window, operand 3, single buffered']
    #allocation8 [shape = 'u8[16384]{0}', space=vmem, size = 0x4000, scoped, tag = 'output window, operand 0, single buffered']
    %10 = vsyncpa [#allocation3], 0
    %11 = vsyncpa [#allocation6], 0
    %12 = vsyncpa [#allocation4], 0
    // Predicated region
    $region2: #{tpu_custom_call.1} parent=1 // pred_check
      _
    $region3: #{tpu_custom_call.1} parent=1 // pred_check_branch
      %14 = sbr.rel (0) target = $region5
    $region4: #{tpu_custom_call.1} parent=1 // pred_region
      %s16 = ssub.s32 256, 256
      %17 = vsyncadd [#allocation3], %s16
      %s18 = sshll.u32 [#allocation2], 4
      %s19 = int_to_ptr.vmem [resolvable:$true] %s18
      %24 = dma.hbm_to_vmem [thread:$0]  %s0, 256, %s19, [#allocation3], 64, 64, 4
    $region5: #{tpu_custom_call.1} parent=1 // pred_fallthru
      _
    // Predicated region
    $region6: #{tpu_custom_call.1} parent=1 // pred_check
      _
    $region7: #{tpu_custom_call.1} parent=1 // pred_check_branch
      %26 = sbr.rel (0) target = $region9
    $region8: #{tpu_custom_call.1} parent=1 // pred_region
      %s28 = ssub.s32 3072, 3072
      %29 = vsyncadd [#allocation6], %s28
      %s30 = sshll.u32 [#allocation5], 4
      %s31 = int_to_ptr.vmem [resolvable:$true] %s30
      %36 = dma.hbm_to_vmem [thread:$0]  %s1, 3072, %s31, [#allocation6], 64, 64, 4
    $region9: #{tpu_custom_call.1} parent=1 // pred_fallthru
      _
    // Predicated region
    $region10: #{tpu_custom_call.1} parent=1 // pred_check
      _
    $region11: #{tpu_custom_call.1} parent=1 // pred_check_branch
      %38 = sbr.rel (0) target = $region13
    $region12: #{tpu_custom_call.1} parent=1 // pred_region
      _
    $region13: #{tpu_custom_call.1} parent=1 // pred_fallthru
      _
    // Predicated region
    $region14: #{tpu_custom_call.1} parent=1 // pred_check
      _
    $region15: #{tpu_custom_call.1} parent=1 // pred_check_branch
      %40 = sbr.rel (0) target = $region17
    $region16: #{tpu_custom_call.1} parent=1 // pred_region
      %s42 = ssub.s32 3072, 3072
      %43 = vsyncadd [#allocation6], %s42
      %s44 = sshll.u32 [#allocation7], 4
      %s45 = int_to_ptr.vmem [resolvable:$true] %s44
      %50 = dma.hbm_to_vmem [thread:$0]  %s3, 3072, %s45, [#allocation6], 64, 64, 4
    $region17: #{tpu_custom_call.1} parent=1 // pred_fallthru
      _
    // Predicated region
    $region18: #{tpu_custom_call.1} parent=1 // pred_check
      _
    $region19: #{tpu_custom_call.1} parent=1 // pred_check_branch
      %52 = sbr.rel (0) target = $region21
    $region20: #{tpu_custom_call.1} parent=1 // pred_region
      _
    $region21: #{tpu_custom_call.1} parent=1 // pred_fallthru
      _
    // Predicated region
    $region22: #{tpu_custom_call.1} parent=1 // pred_check
      _
    $region23: #{tpu_custom_call.1} parent=1 // pred_check_branch
      %54 = sbr.rel (0) target = $region25
    $region24: #{tpu_custom_call.1} parent=1 // pred_region
      %55 = dma.done [#allocation3], 256
    $region25: #{tpu_custom_call.1} parent=1 // pred_fallthru
      _
    // Predicated region
    $region26: #{tpu_custom_call.1} parent=1 // pred_check
      _
    $region27: #{tpu_custom_call.1} parent=1 // pred_check_branch
      %57 = sbr.rel (0) target = $region29
    $region28: #{tpu_custom_call.1} parent=1 // pred_region
      %58 = dma.done [#allocation6], 3072
    $region29: #{tpu_custom_call.1} parent=1 // pred_fallthru
      _
    // Predicated region
    $region30: #{tpu_custom_call.1} parent=1 // pred_check
      _
    $region31: #{tpu_custom_call.1} parent=1 // pred_check_branch
      %60 = sbr.rel (0) target = $region33
    $region32: #{tpu_custom_call.1} parent=1 // pred_region
      %61 = dma.done [#allocation6], 3072
    $region33: #{tpu_custom_call.1} parent=1 // pred_fallthru
      _
    %v63 = vlaneseq
    %v64 = vshrl.u32 %v63, 7
    %v65 = vadd.s32 %v64, 8
    %v66 = vadd.s32 %v64, 16
    %v67 = vadd.s32 %v64, 24
    %vm68 = vcmp.lt.s32.totalorder %v64, 0
    %v69 = vsub.s32 0, %v64
    %v70 = vsel %vm68, %v69, %v64
    %v71 = vshrl.u32 %v70, 4
    %v72 = vand.u32 %v70, 15
    %v73 = vsub.s32 0, %v72
    %v74 = vsel %vm68, %v73, %v72
    %vm75 = vcmp.lt.s32.totalorder %v65, 0
    %v76 = vsub.s32 0, %v65
    %v77 = vsel %vm75, %v76, %v65
    %v78 = vshrl.u32 %v77, 4
    %v79 = vand.u32 %v77, 15
    %v80 = vsub.s32 0, %v79
    %v81 = vsel %vm75, %v80, %v79
    %vm82 = vcmp.lt.s32.totalorder %v66, 0
    %v83 = vsub.s32 0, %v66
    %v84 = vsel %vm82, %v83, %v66
    %v85 = vshrl.u32 %v84, 4
    %v86 = vand.u32 %v84, 15
    %v87 = vsub.s32 0, %v86
    %v88 = vsel %vm82, %v87, %v86
    %vm89 = vcmp.lt.s32.totalorder %v67, 0
    %v90 = vsub.s32 0, %v67
    %v91 = vsel %vm89, %v90, %v67
    %v92 = vshrl.u32 %v91, 4
    %v93 = vand.u32 %v91, 15
    %v94 = vsub.s32 0, %v93
    %v95 = vsel %vm89, %v94, %v93
    %vm96 = vcmp.ne.s32.totalorder %v74, 0
    %vm97 = vcmp.ne.s32.totalorder %v81, 0
    %vm98 = vcmp.ne.s32.totalorder %v88, 0
    %vm99 = vcmp.ne.s32.totalorder %v95, 0
    %vm100 = vcmp.ne.s32.totalorder %v74, 15
    %vm101 = vcmp.ne.s32.totalorder %v81, 15
    %vm102 = vcmp.ne.s32.totalorder %v88, 15
    %vm103 = vcmp.ne.s32.totalorder %v95, 15
    %v104 = vld [vmem:[#allocation2] sm:$0xf]
    %v105 = vld [vmem:[#allocation2 + $0x4] sm:$0xf]
    %v106 = vld [vmem:[#allocation2 + $0x8] sm:$0xf]
    %v107 = vld [vmem:[#allocation2 + $0xc] sm:$0xf]
    %v108 = vld [vmem:[#allocation5] sm:$0xf]
    %v109 = vld [vmem:[#allocation5 + $0x4] sm:$0xf]
    %v110 = vld [vmem:[#allocation5 + $0x8] sm:$0xf]
    %v111 = vld [vmem:[#allocation5 + $0xc] sm:$0xf]
    %v112 = vld [vmem:[#allocation5 + $0x10] sm:$0xf]
    %v113 = vld [vmem:[#allocation5 + $0x14] sm:$0xf]
    %v114 = vld [vmem:[#allocation5 + $0x18] sm:$0xf]
    %v115 = vld [vmem:[#allocation5 + $0x1c] sm:$0xf]
    %v116 = vld [vmem:[#allocation5 + $0x20] sm:$0xf]
    %v117 = vld [vmem:[#allocation5 + $0x24] sm:$0xf]
    %v118 = vld [vmem:[#allocation5 + $0x28] sm:$0xf]
    %v119 = vld [vmem:[#allocation5 + $0x2c] sm:$0xf]
    %v120 = vld [vmem:[#allocation5 + $0x30] sm:$0xf]
    %v121 = vld [vmem:[#allocation5 + $0x34] sm:$0xf]
    %v122 = vld [vmem:[#allocation5 + $0x38] sm:$0xf]
    %v123 = vld [vmem:[#allocation5 + $0x3c] sm:$0xf]
    %v128 = vunpack.c.l.b16 %v104
    %v129 = vunpack.c.l.b16 %v105
    %v130 = vunpack.c.l.b16 %v106
    %v131 = vunpack.c.l.b16 %v107
    %v132 = vpack.c.b16 %v129, %v128
    %v133 = vpack.c.b16 %v131, %v130
    %v152 = vunpack.c.l.b16 %v108
    %v153 = vunpack.c.l.b16 %v109
    %v154 = vunpack.c.l.b16 %v110
    %v155 = vunpack.c.l.b16 %v111
    %v156 = vunpack.c.l.b16 %v112
    %v157 = vunpack.c.l.b16 %v113
    %v158 = vunpack.c.l.b16 %v114
    %v159 = vunpack.c.l.b16 %v115
    %v160 = vunpack.c.l.b16 %v116
    %v161 = vunpack.c.l.b16 %v117
    %v162 = vunpack.c.l.b16 %v118
    %v163 = vunpack.c.l.b16 %v119
    %v164 = vunpack.c.l.b16 %v120
    %v165 = vunpack.c.l.b16 %v121
    %v166 = vunpack.c.l.b16 %v122
    %v167 = vunpack.c.l.b16 %v123
    %v168 = vpack.c.b16 %v153, %v152
    %v169 = vpack.c.b16 %v155, %v154
    %v170 = vpack.c.b16 %v157, %v156
    %v171 = vpack.c.b16 %v159, %v158
    %v172 = vpack.c.b16 %v161, %v160
    %v173 = vpack.c.b16 %v163, %v162
    %v174 = vpack.c.b16 %v165, %v164
    %v175 = vpack.c.b16 %v167, %v166
    %184 = vmatprep.subr.bf16.mxu0 0
    %185 = vmatpush1.bf16.msra.mxu0 %v168
    %186 = vmatprep.subr.bf16.mxu0 0
    %187 = vmatpush1.bf16.msra.mxu0 %v169
    %188 = vmatprep.subr.bf16.mxu0 0
    %189 = vmatpush1.bf16.msra.mxu0 %v170
    %190 = vmatprep.subr.bf16.mxu0 0
    %191 = vmatpush1.bf16.msra.mxu0 %v171
    %192 = vmatprep.subr.bf16.mxu0 0
    %193 = vmatpush1.bf16.msra.mxu0 %v172
    %194 = vmatprep.subr.bf16.mxu0 0
    %195 = vmatpush1.bf16.msra.mxu0 %v173
    %196 = vmatprep.subr.bf16.mxu0 0
    %197 = vmatpush1.bf16.msra.mxu0 %v174
    %198 = vmatprep.subr.bf16.mxu0 0
    %199 = vmatpush1.bf16.msra.mxu0 %v175
    %200 = vmatprep.subr.bf16.mxu0 0
    %201 = vmatpush1.bf16.msra.mxu0 0
    %202 = vmatprep.subr.bf16.mxu0 0
    %203 = vmatpush1.bf16.msra.mxu0 0
    %204 = vmatprep.subr.bf16.mxu0 0
    %205 = vmatpush1.bf16.msra.mxu0 0
    %206 = vmatprep.subr.bf16.mxu0 0
    %207 = vmatpush1.bf16.msra.mxu0 0
    %208 = vmatprep.subr.bf16.mxu0 0
    %209 = vmatpush1.bf16.msra.mxu0 0
    %210 = vmatprep.subr.bf16.mxu0 0
    %211 = vmatpush1.bf16.msra.mxu0 0
    %212 = vmatprep.subr.bf16.mxu0 0
    %213 = vmatpush1.bf16.msra.mxu0 0
    %214 = vmatprep.subr.bf16.mxu0 0
    %215 = vmatpush1.bf16.msra.mxu0 0
    %216 = vmatprep.mubr.bf16.mxu0 0
    %217 = vmatmul.mubr.bf16.gmra.mrb[0].mxu0 %v132
    %v218 = vpop.f32.mrb[0].mxu0
    %v219 = vadd.f32 0.0, %v218
    %v220 = vpop.f32.mrb[0].mxu0
    %v221 = vpop.f32.mrb[0].mxu0
    %v222 = vadd.f32 0.0, %v221
    %v223 = vpop.f32.mrb[0].mxu0
    %224 = vmatprep.mubr.bf16.mxu0 0
    %225 = vmatmul.mubr.bf16.gmra.mrb[0].mxu0 %v133
    %v226 = vpop.f32.mrb[0].mxu0
    %v227 = vadd.f32 0.0, %v226
    %v228 = vpop.f32.mrb[0].mxu0
    %v229 = vpop.f32.mrb[0].mxu0
    %v230 = vadd.f32 0.0, %v229
    %v231 = vpop.f32.mrb[0].mxu0
    %232 = vdwg.mxu0
    %s233 = scalar_lea.vmem [#allocation5], 64
    %v234 = vld [vmem:[%s233] sm:$0xf]
    %v235 = vld [vmem:[%s233 + $0x4] sm:$0xf]
    %v236 = vld [vmem:[%s233 + $0x8] sm:$0xf]
    %v237 = vld [vmem:[%s233 + $0xc] sm:$0xf]
    %v238 = vld [vmem:[%s233 + $0x10] sm:$0xf]
    %v239 = vld [vmem:[%s233 + $0x14] sm:$0xf]
    %v240 = vld [vmem:[%s233 + $0x18] sm:$0xf]
    %v241 = vld [vmem:[%s233 + $0x1c] sm:$0xf]
    %v242 = vld [vmem:[%s233 + $0x20] sm:$0xf]
    %v243 = vld [vmem:[%s233 + $0x24] sm:$0xf]
    %v244 = vld [vmem:[%s233 + $0x28] sm:$0xf]
    %v245 = vld [vmem:[%s233 + $0x2c] sm:$0xf]
    %v246 = vld [vmem:[%s233 + $0x30] sm:$0xf]
    %v247 = vld [vmem:[%s233 + $0x34] sm:$0xf]
    %v248 = vld [vmem:[%s233 + $0x38] sm:$0xf]
    %v249 = vld [vmem:[%s233 + $0x3c] sm:$0xf]
    %s250 = scalar_lea.vmem [#allocation5], 128
    %v251 = vld [vmem:[%s250] sm:$0xf]
    %v252 = vld [vmem:[%s250 + $0x4] sm:$0xf]
    %v253 = vld [vmem:[%s250 + $0x8] sm:$0xf]
    %v254 = vld [vmem:[%s250 + $0xc] sm:$0xf]
    %v255 = vld [vmem:[%s250 + $0x10] sm:$0xf]
    %v256 = vld [vmem:[%s250 + $0x14] sm:$0xf]
    %v257 = vld [vmem:[%s250 + $0x18] sm:$0xf]
    %v258 = vld [vmem:[%s250 + $0x1c] sm:$0xf]
    %v259 = vld [vmem:[%s250 + $0x20] sm:$0xf]
    %v260 = vld [vmem:[%s250 + $0x24] sm:$0xf]
    %v261 = vld [vmem:[%s250 + $0x28] sm:$0xf]
    %v262 = vld [vmem:[%s250 + $0x2c] sm:$0xf]
    %v263 = vld [vmem:[%s250 + $0x30] sm:$0xf]
    %v264 = vld [vmem:[%s250 + $0x34] sm:$0xf]
    %v265 = vld [vmem:[%s250 + $0x38] sm:$0xf]
    %v266 = vld [vmem:[%s250 + $0x3c] sm:$0xf]
    %v283 = vunpack.c.l.b16 %v251
    %v284 = vunpack.c.l.b16 %v252
    %v285 = vunpack.c.l.b16 %v253
    %v286 = vunpack.c.l.b16 %v254
    %v287 = vunpack.c.l.b16 %v255
    %v288 = vunpack.c.l.b16 %v256
    %v289 = vunpack.c.l.b16 %v257
    %v290 = vunpack.c.l.b16 %v258
    %v291 = vunpack.c.l.b16 %v259
    %v292 = vunpack.c.l.b16 %v260
    %v293 = vunpack.c.l.b16 %v261
    %v294 = vunpack.c.l.b16 %v262
    %v295 = vunpack.c.l.b16 %v263
    %v296 = vunpack.c.l.b16 %v264
    %v297 = vunpack.c.l.b16 %v265
    %v298 = vunpack.c.l.b16 %v266
    %v299 = vpack.c.b16 %v284, %v283
    %v300 = vpack.c.b16 %v286, %v285
    %v301 = vpack.c.b16 %v288, %v287
    %v302 = vpack.c.b16 %v290, %v289
    %v303 = vpack.c.b16 %v292, %v291
    %v304 = vpack.c.b16 %v294, %v293
    %v305 = vpack.c.b16 %v296, %v295
    %v306 = vpack.c.b16 %v298, %v297
    %315 = vmatprep.subr.bf16.mxu0 0
    %316 = vmatpush1.bf16.msra.mxu0 %v299
    %317 = vmatprep.subr.bf16.mxu0 0
    %318 = vmatpush1.bf16.msra.mxu0 %v300
    %319 = vmatprep.subr.bf16.mxu0 0
    %320 = vmatpush1.bf16.msra.mxu0 %v301
    %321 = vmatprep.subr.bf16.mxu0 0
    %322 = vmatpush1.bf16.msra.mxu0 %v302
    %323 = vmatprep.subr.bf16.mxu0 0
    %324 = vmatpush1.bf16.msra.mxu0 %v303
    %325 = vmatprep.subr.bf16.mxu0 0
    %326 = vmatpush1.bf16.msra.mxu0 %v304
    %327 = vmatprep.subr.bf16.mxu0 0
    %328 = vmatpush1.bf16.msra.mxu0 %v305
    %329 = vmatprep.subr.bf16.mxu0 0
    %330 = vmatpush1.bf16.msra.mxu0 %v306
    %331 = vmatprep.subr.bf16.mxu0 0
    %332 = vmatpush1.bf16.msra.mxu0 0
    %333 = vmatprep.subr.bf16.mxu0 0
    %334 = vmatpush1.bf16.msra.mxu0 0
    %335 = vmatprep.subr.bf16.mxu0 0
    %336 = vmatpush1.bf16.msra.mxu0 0
    %337 = vmatprep.subr.bf16.mxu0 0
    %338 = vmatpush1.bf16.msra.mxu0 0
    %339 = vmatprep.subr.bf16.mxu0 0
    %340 = vmatpush1.bf16.msra.mxu0 0
    %341 = vmatprep.subr.bf16.mxu0 0
    %342 = vmatpush1.bf16.msra.mxu0 0
    %343 = vmatprep.subr.bf16.mxu0 0
    %344 = vmatpush1.bf16.msra.mxu0 0
    %345 = vmatprep.subr.bf16.mxu0 0
    %346 = vmatpush1.bf16.msra.mxu0 0
    %347 = vmatprep.mubr.bf16.mxu0 0
    %348 = vmatmul.mubr.bf16.gmra.mrb[0].mxu0 %v132
    %v349 = vpop.f32.mrb[0].mxu0
    %v350 = vadd.f32 0.0, %v349
    %v351 = vpop.f32.mrb[0].mxu0
    %v352 = vpop.f32.mrb[0].mxu0
    %v353 = vadd.f32 0.0, %v352
    %v354 = vpop.f32.mrb[0].mxu0
    %355 = vmatprep.mubr.bf16.mxu0 0
    %356 = vmatmul.mubr.bf16.gmra.mrb[0].mxu0 %v133
    %v357 = vpop.f32.mrb[0].mxu0
    %v358 = vadd.f32 0.0, %v357
    %v359 = vpop.f32.mrb[0].mxu0
    %v360 = vpop.f32.mrb[0].mxu0
    %v361 = vadd.f32 0.0, %v360
    %v362 = vpop.f32.mrb[0].mxu0
    %363 = vdwg.mxu0
    %v364 = vrot.slane %v219, 7
    %v365 = vrot.slane %v222, 7
    %v366 = vrot.slane %v227, 7
    %v367 = vrot.slane %v230, 7
    %vm368 = vcmp.lt.s32.totalorder %v64, 1
    %v369 = vsel %vm368, %v366, %v367
    %v370 = vsel %vm368, %v365, %v366
    %v371 = vsel %vm368, %v364, %v365
    %v372 = vsel %vm368, %v367, %v364
    %v373 = vsel %vm96, %v372, 0.0
    %v374 = vsel %vm97, %v371, 0.0
    %v375 = vsel %vm98, %v370, 0.0
    %v376 = vsel %vm99, %v369, 0.0
    %v377 = vrot.slane %v350, 1
    %v378 = vrot.slane %v353, 1
    %v379 = vrot.slane %v358, 1
    %v380 = vrot.slane %v361, 1
    %vm381 = vcmp.lt.s32.totalorder %v64, 7
    %v382 = vsel %vm381, %v379, %v380
    %v383 = vsel %vm381, %v378, %v379
    %v384 = vsel %vm381, %v377, %v378
    %v385 = vsel %vm381, %v380, %v377
    %v386 = vsel %vm100, %v384, 0.0
    %v387 = vsel %vm101, %v383, 0.0
    %v388 = vsel %vm102, %v382, 0.0
    %v389 = vsel %vm103, %v385, 0.0
    %v406 = vunpack.c.l.b16 %v234
    %v407 = vunpack.c.l.b16 %v235
    %v408 = vunpack.c.l.b16 %v236
    %v409 = vunpack.c.l.b16 %v237
    %v410 = vunpack.c.l.b16 %v238
    %v411 = vunpack.c.l.b16 %v239
    %v412 = vunpack.c.l.b16 %v240
    %v413 = vunpack.c.l.b16 %v241
    %v414 = vunpack.c.l.b16 %v242
    %v415 = vunpack.c.l.b16 %v243
    %v416 = vunpack.c.l.b16 %v244
    %v417 = vunpack.c.l.b16 %v245
    %v418 = vunpack.c.l.b16 %v246
    %v419 = vunpack.c.l.b16 %v247
    %v420 = vunpack.c.l.b16 %v248
    %v421 = vunpack.c.l.b16 %v249
    %v422 = vpack.c.b16 %v407, %v406
    %v423 = vpack.c.b16 %v409, %v408
    %v424 = vpack.c.b16 %v411, %v410
    %v425 = vpack.c.b16 %v413, %v412
    %v426 = vpack.c.b16 %v415, %v414
    %v427 = vpack.c.b16 %v417, %v416
    %v428 = vpack.c.b16 %v419, %v418
    %v429 = vpack.c.b16 %v421, %v420
    %438 = vmatprep.subr.bf16.mxu0 0
    %439 = vmatpush1.bf16.msra.mxu0 %v422
    %440 = vmatprep.subr.bf16.mxu0 0
    %441 = vmatpush1.bf16.msra.mxu0 %v423
    %442 = vmatprep.subr.bf16.mxu0 0
    %443 = vmatpush1.bf16.msra.mxu0 %v424
    %444 = vmatprep.subr.bf16.mxu0 0
    %445 = vmatpush1.bf16.msra.mxu0 %v425
    %446 = vmatprep.subr.bf16.mxu0 0
    %447 = vmatpush1.bf16.msra.mxu0 %v426
    %448 = vmatprep.subr.bf16.mxu0 0
    %449 = vmatpush1.bf16.msra.mxu0 %v427
    %450 = vmatprep.subr.bf16.mxu0 0
    %451 = vmatpush1.bf16.msra.mxu0 %v428
    %452 = vmatprep.subr.bf16.mxu0 0
    %453 = vmatpush1.bf16.msra.mxu0 %v429
    %454 = vmatprep.subr.bf16.mxu0 0
    %455 = vmatpush1.bf16.msra.mxu0 0
    %456 = vmatprep.subr.bf16.mxu0 0
    %457 = vmatpush1.bf16.msra.mxu0 0
    %458 = vmatprep.subr.bf16.mxu0 0
    %459 = vmatpush1.bf16.msra.mxu0 0
    %460 = vmatprep.subr.bf16.mxu0 0
    %461 = vmatpush1.bf16.msra.mxu0 0
    %462 = vmatprep.subr.bf16.mxu0 0
    %463 = vmatpush1.bf16.msra.mxu0 0
    %464 = vmatprep.subr.bf16.mxu0 0
    %465 = vmatpush1.bf16.msra.mxu0 0
    %466 = vmatprep.subr.bf16.mxu0 0
    %467 = vmatpush1.bf16.msra.mxu0 0
    %468 = vmatprep.subr.bf16.mxu0 0
    %469 = vmatpush1.bf16.msra.mxu0 0
    %470 = vmatprep.mubr.bf16.mxu0 0
    %471 = vmatmul.mubr.bf16.gmra.mrb[0].mxu0 %v132
    %v472 = vpop.f32.mrb[0].mxu0
    %v473 = vadd.f32 %v373, %v472
    %v474 = vpop.f32.mrb[0].mxu0
    %v475 = vpop.f32.mrb[0].mxu0
    %v476 = vadd.f32 %v374, %v475
    %v477 = vpop.f32.mrb[0].mxu0
    %478 = vmatprep.mubr.bf16.mxu0 0
    %479 = vmatmul.mubr.bf16.gmra.mrb[0].mxu0 %v133
    %v480 = vpop.f32.mrb[0].mxu0
    %v481 = vadd.f32 %v375, %v480
    %v482 = vpop.f32.mrb[0].mxu0
    %v483 = vpop.f32.mrb[0].mxu0
    %v484 = vadd.f32 %v376, %v483
    %v485 = vpop.f32.mrb[0].mxu0
    %486 = vdwg.mxu0
    %v487 = vadd.f32 %v473, %v386
    %v488 = vadd.f32 %v476, %v387
    %v489 = vadd.f32 %v481, %v388
    %v490 = vadd.f32 %v484, %v389
    %v491 = vld [vmem:[%s2] sm:$0x1]
    %v493 = vlaneseq
    %v494 = vshrl.u32 %v493, 7
    %v495 = vsub.s32 0, %v494
    %v496 = vrot.slane %v491, %v495
    %v498 = vadd.f32 %v487, %v496
    %v499 = vadd.f32 %v488, %v496
    %v500 = vadd.f32 %v489, %v496
    %v501 = vadd.f32 %v490, %v496
    %v502 = vmax.f32 %v498, 0.0
    %v503 = vmax.f32 %v499, 0.0
    %v504 = vmax.f32 %v500, 0.0
    %v505 = vmax.f32 %v501, 0.0
    %v506 = vpack.c.bf16 %v503, %v502
    %v507 = vpack.c.bf16 %v505, %v504
    %v508 = vld [vmem:[#allocation7] sm:$0xf]
    %v509 = vld [vmem:[#allocation7 + $0x4] sm:$0xf]
    %v510 = vld [vmem:[#allocation7 + $0x8] sm:$0xf]
    %v511 = vld [vmem:[#allocation7 + $0xc] sm:$0xf]
    %v512 = vld [vmem:[#allocation7 + $0x10] sm:$0xf]
    %v513 = vld [vmem:[#allocation7 + $0x14] sm:$0xf]
    %v514 = vld [vmem:[#allocation7 + $0x18] sm:$0xf]
    %v515 = vld [vmem:[#allocation7 + $0x1c] sm:$0xf]
    %v516 = vld [vmem:[#allocation7 + $0x20] sm:$0xf]
    %v517 = vld [vmem:[#allocation7 + $0x24] sm:$0xf]
    %v518 = vld [vmem:[#allocation7 + $0x28] sm:$0xf]
    %v519 = vld [vmem:[#allocation7 + $0x2c] sm:$0xf]
    %v520 = vld [vmem:[#allocation7 + $0x30] sm:$0xf]
    %v521 = vld [vmem:[#allocation7 + $0x34] sm:$0xf]
    %v522 = vld [vmem:[#allocation7 + $0x38] sm:$0xf]
    %v523 = vld [vmem:[#allocation7 + $0x3c] sm:$0xf]
    %v540 = vunpack.c.l.b16 %v508
    %v541 = vunpack.c.l.b16 %v509
    %v542 = vunpack.c.l.b16 %v510
    %v543 = vunpack.c.l.b16 %v511
    %v544 = vunpack.c.l.b16 %v512
    %v545 = vunpack.c.l.b16 %v513
    %v546 = vunpack.c.l.b16 %v514
    %v547 = vunpack.c.l.b16 %v515
    %v548 = vunpack.c.l.b16 %v516
    %v549 = vunpack.c.l.b16 %v517
    %v550 = vunpack.c.l.b16 %v518
    %v551 = vunpack.c.l.b16 %v519
    %v552 = vunpack.c.l.b16 %v520
    %v553 = vunpack.c.l.b16 %v521
    %v554 = vunpack.c.l.b16 %v522
    %v555 = vunpack.c.l.b16 %v523
    %v556 = vpack.c.b16 %v541, %v540
    %v557 = vpack.c.b16 %v543, %v542
    %v558 = vpack.c.b16 %v545, %v544
    %v559 = vpack.c.b16 %v547, %v546
    %v560 = vpack.c.b16 %v549, %v548
    %v561 = vpack.c.b16 %v551, %v550
    %v562 = vpack.c.b16 %v553, %v552
    %v563 = vpack.c.b16 %v555, %v554
    %572 = vmatprep.subr.bf16.mxu0 0
    %573 = vmatpush1.bf16.msra.mxu0 %v556
    %574 = vmatprep.subr.bf16.mxu0 0
    %575 = vmatpush1.bf16.msra.mxu0 %v557
    %576 = vmatprep.subr.bf16.mxu0 0
    %577 = vmatpush1.bf16.msra.mxu0 %v558
    %578 = vmatprep.subr.bf16.mxu0 0
    %579 = vmatpush1.bf16.msra.mxu0 %v559
    %580 = vmatprep.subr.bf16.mxu0 0
    %581 = vmatpush1.bf16.msra.mxu0 %v560
    %582 = vmatprep.subr.bf16.mxu0 0
    %583 = vmatpush1.bf16.msra.mxu0 %v561
    %584 = vmatprep.subr.bf16.mxu0 0
    %585 = vmatpush1.bf16.msra.mxu0 %v562
    %586 = vmatprep.subr.bf16.mxu0 0
    %587 = vmatpush1.bf16.msra.mxu0 %v563
    %588 = vmatprep.subr.bf16.mxu0 0
    %589 = vmatpush1.bf16.msra.mxu0 0
    %590 = vmatprep.subr.bf16.mxu0 0
    %591 = vmatpush1.bf16.msra.mxu0 0
    %592 = vmatprep.subr.bf16.mxu0 0
    %593 = vmatpush1.bf16.msra.mxu0 0
    %594 = vmatprep.subr.bf16.mxu0 0
    %595 = vmatpush1.bf16.msra.mxu0 0
    %596 = vmatprep.subr.bf16.mxu0 0
    %597 = vmatpush1.bf16.msra.mxu0 0
    %598 = vmatprep.subr.bf16.mxu0 0
    %599 = vmatpush1.bf16.msra.mxu0 0
    %600 = vmatprep.subr.bf16.mxu0 0
    %601 = vmatpush1.bf16.msra.mxu0 0
    %602 = vmatprep.subr.bf16.mxu0 0
    %603 = vmatpush1.bf16.msra.mxu0 0
    %604 = vmatprep.mubr.bf16.mxu0 0
    %605 = vmatmul.mubr.bf16.gmra.mrb[0].mxu0 %v506
    %v606 = vpop.f32.mrb[0].mxu0
    %v607 = vadd.f32 0.0, %v606
    %v608 = vpop.f32.mrb[0].mxu0
    %v609 = vpop.f32.mrb[0].mxu0
    %v610 = vadd.f32 0.0, %v609
    %v611 = vpop.f32.mrb[0].mxu0
    %612 = vmatprep.mubr.bf16.mxu0 0
    %613 = vmatmul.mubr.bf16.gmra.mrb[0].mxu0 %v507
    %v614 = vpop.f32.mrb[0].mxu0
    %v615 = vadd.f32 0.0, %v614
    %v616 = vpop.f32.mrb[0].mxu0
    %v617 = vpop.f32.mrb[0].mxu0
    %v618 = vadd.f32 0.0, %v617
    %v619 = vpop.f32.mrb[0].mxu0
    %620 = vdwg.mxu0
    %s621 = scalar_lea.vmem [#allocation7], 64
    %v622 = vld [vmem:[%s621] sm:$0xf]
    %v623 = vld [vmem:[%s621 + $0x4] sm:$0xf]
    %v624 = vld [vmem:[%s621 + $0x8] sm:$0xf]
    %v625 = vld [vmem:[%s621 + $0xc] sm:$0xf]
    %v626 = vld [vmem:[%s621 + $0x10] sm:$0xf]
    %v627 = vld [vmem:[%s621 + $0x14] sm:$0xf]
    %v628 = vld [vmem:[%s621 + $0x18] sm:$0xf]
    %v629 = vld [vmem:[%s621 + $0x1c] sm:$0xf]
    %v630 = vld [vmem:[%s621 + $0x20] sm:$0xf]
    %v631 = vld [vmem:[%s621 + $0x24] sm:$0xf]
    %v632 = vld [vmem:[%s621 + $0x28] sm:$0xf]
    %v633 = vld [vmem:[%s621 + $0x2c] sm:$0xf]
    %v634 = vld [vmem:[%s621 + $0x30] sm:$0xf]
    %v635 = vld [vmem:[%s621 + $0x34] sm:$0xf]
    %v636 = vld [vmem:[%s621 + $0x38] sm:$0xf]
    %v637 = vld [vmem:[%s621 + $0x3c] sm:$0xf]
    %s638 = scalar_lea.vmem [#allocation7], 128
    %v639 = vld [vmem:[%s638] sm:$0xf]
    %v640 = vld [vmem:[%s638 + $0x4] sm:$0xf]
    %v641 = vld [vmem:[%s638 + $0x8] sm:$0xf]
    %v642 = vld [vmem:[%s638 + $0xc] sm:$0xf]
    %v643 = vld [vmem:[%s638 + $0x10] sm:$0xf]
    %v644 = vld [vmem:[%s638 + $0x14] sm:$0xf]
    %v645 = vld [vmem:[%s638 + $0x18] sm:$0xf]
    %v646 = vld [vmem:[%s638 + $0x1c] sm:$0xf]
    %v647 = vld [vmem:[%s638 + $0x20] sm:$0xf]
    %v648 = vld [vmem:[%s638 + $0x24] sm:$0xf]
    %v649 = vld [vmem:[%s638 + $0x28] sm:$0xf]
    %v650 = vld [vmem:[%s638 + $0x2c] sm:$0xf]
    %v651 = vld [vmem:[%s638 + $0x30] sm:$0xf]
    %v652 = vld [vmem:[%s638 + $0x34] sm:$0xf]
    %v653 = vld [vmem:[%s638 + $0x38] sm:$0xf]
    %v654 = vld [vmem:[%s638 + $0x3c] sm:$0xf]
    %v671 = vunpack.c.l.b16 %v639
    %v672 = vunpack.c.l.b16 %v640
    %v673 = vunpack.c.l.b16 %v641
    %v674 = vunpack.c.l.b16 %v642
    %v675 = vunpack.c.l.b16 %v643
    %v676 = vunpack.c.l.b16 %v644
    %v677 = vunpack.c.l.b16 %v645
    %v678 = vunpack.c.l.b16 %v646
    %v679 = vunpack.c.l.b16 %v647
    %v680 = vunpack.c.l.b16 %v648
    %v681 = vunpack.c.l.b16 %v649
    %v682 = vunpack.c.l.b16 %v650
    %v683 = vunpack.c.l.b16 %v651
    %v684 = vunpack.c.l.b16 %v652
    %v685 = vunpack.c.l.b16 %v653
    %v686 = vunpack.c.l.b16 %v654
    %v687 = vpack.c.b16 %v672, %v671
    %v688 = vpack.c.b16 %v674, %v673
    %v689 = vpack.c.b16 %v676, %v675
    %v690 = vpack.c.b16 %v678, %v677
    %v691 = vpack.c.b16 %v680, %v679
    %v692 = vpack.c.b16 %v682, %v681
    %v693 = vpack.c.b16 %v684, %v683
    %v694 = vpack.c.b16 %v686, %v685
    %703 = vmatprep.subr.bf16.mxu0 0
    %704 = vmatpush1.bf16.msra.mxu0 %v687
    %705 = vmatprep.subr.bf16.mxu0 0
    %706 = vmatpush1.bf16.msra.mxu0 %v688
    %707 = vmatprep.subr.bf16.mxu0 0
    %708 = vmatpush1.bf16.msra.mxu0 %v689
    %709 = vmatprep.subr.bf16.mxu0 0
    %710 = vmatpush1.bf16.msra.mxu0 %v690
    %711 = vmatprep.subr.bf16.mxu0 0
    %712 = vmatpush1.bf16.msra.mxu0 %v691
    %713 = vmatprep.subr.bf16.mxu0 0
    %714 = vmatpush1.bf16.msra.mxu0 %v692
    %715 = vmatprep.subr.bf16.mxu0 0
    %716 = vmatpush1.bf16.msra.mxu0 %v693
    %717 = vmatprep.subr.bf16.mxu0 0
    %718 = vmatpush1.bf16.msra.mxu0 %v694
    %719 = vmatprep.subr.bf16.mxu0 0
    %720 = vmatpush1.bf16.msra.mxu0 0
    %721 = vmatprep.subr.bf16.mxu0 0
    %722 = vmatpush1.bf16.msra.mxu0 0
    %723 = vmatprep.subr.bf16.mxu0 0
    %724 = vmatpush1.bf16.msra.mxu0 0
    %725 = vmatprep.subr.bf16.mxu0 0
    %726 = vmatpush1.bf16.msra.mxu0 0
    %727 = vmatprep.subr.bf16.mxu0 0
    %728 = vmatpush1.bf16.msra.mxu0 0
    %729 = vmatprep.subr.bf16.mxu0 0
    %730 = vmatpush1.bf16.msra.mxu0 0
    %731 = vmatprep.subr.bf16.mxu0 0
    %732 = vmatpush1.bf16.msra.mxu0 0
    %733 = vmatprep.subr.bf16.mxu0 0
    %734 = vmatpush1.bf16.msra.mxu0 0
    %735 = vmatprep.mubr.bf16.mxu0 0
    %736 = vmatmul.mubr.bf16.gmra.mrb[0].mxu0 %v506
    %v737 = vpop.f32.mrb[0].mxu0
    %v738 = vadd.f32 0.0, %v737
    %v739 = vpop.f32.mrb[0].mxu0
    %v740 = vpop.f32.mrb[0].mxu0
    %v741 = vadd.f32 0.0, %v740
    %v742 = vpop.f32.mrb[0].mxu0
    %743 = vmatprep.mubr.bf16.mxu0 0
    %744 = vmatmul.mubr.bf16.gmra.mrb[0].mxu0 %v507
    %v745 = vpop.f32.mrb[0].mxu0
    %v746 = vadd.f32 0.0, %v745
    %v747 = vpop.f32.mrb[0].mxu0
    %v748 = vpop.f32.mrb[0].mxu0
    %v749 = vadd.f32 0.0, %v748
    %v750 = vpop.f32.mrb[0].mxu0
    %751 = vdwg.mxu0
    %v752 = vrot.slane %v607, 7
    %v753 = vrot.slane %v610, 7
    %v754 = vrot.slane %v615, 7
    %v755 = vrot.slane %v618, 7
    %v756 = vsel %vm368, %v754, %v755
    %v757 = vsel %vm368, %v753, %v754
    %v758 = vsel %vm368, %v752, %v753
    %v759 = vsel %vm368, %v755, %v752
    %v760 = vsel %vm96, %v759, 0.0
    %v761 = vsel %vm97, %v758, 0.0
    %v762 = vsel %vm98, %v757, 0.0
    %v763 = vsel %vm99, %v756, 0.0
    %v764 = vrot.slane %v738, 1
    %v765 = vrot.slane %v741, 1
    %v766 = vrot.slane %v746, 1
    %v767 = vrot.slane %v749, 1
    %v768 = vsel %vm381, %v766, %v767
    %v769 = vsel %vm381, %v765, %v766
    %v770 = vsel %vm381, %v764, %v765
    %v771 = vsel %vm381, %v767, %v764
    %v772 = vsel %vm100, %v770, 0.0
    %v773 = vsel %vm101, %v769, 0.0
    %v774 = vsel %vm102, %v768, 0.0
    %v775 = vsel %vm103, %v771, 0.0
    %v792 = vunpack.c.l.b16 %v622
    %v793 = vunpack.c.l.b16 %v623
    %v794 = vunpack.c.l.b16 %v624
    %v795 = vunpack.c.l.b16 %v625
    %v796 = vunpack.c.l.b16 %v626
    %v797 = vunpack.c.l.b16 %v627
    %v798 = vunpack.c.l.b16 %v628
    %v799 = vunpack.c.l.b16 %v629
    %v800 = vunpack.c.l.b16 %v630
    %v801 = vunpack.c.l.b16 %v631
    %v802 = vunpack.c.l.b16 %v632
    %v803 = vunpack.c.l.b16 %v633
    %v804 = vunpack.c.l.b16 %v634
    %v805 = vunpack.c.l.b16 %v635
    %v806 = vunpack.c.l.b16 %v636
    %v807 = vunpack.c.l.b16 %v637
    %v808 = vpack.c.b16 %v793, %v792
    %v809 = vpack.c.b16 %v795, %v794
    %v810 = vpack.c.b16 %v797, %v796
    %v811 = vpack.c.b16 %v799, %v798
    %v812 = vpack.c.b16 %v801, %v800
    %v813 = vpack.c.b16 %v803, %v802
    %v814 = vpack.c.b16 %v805, %v804
    %v815 = vpack.c.b16 %v807, %v806
    %824 = vmatprep.subr.bf16.mxu0 0
    %825 = vmatpush1.bf16.msra.mxu0 %v808
    %826 = vmatprep.subr.bf16.mxu0 0
    %827 = vmatpush1.bf16.msra.mxu0 %v809
    %828 = vmatprep.subr.bf16.mxu0 0
    %829 = vmatpush1.bf16.msra.mxu0 %v810
    %830 = vmatprep.subr.bf16.mxu0 0
    %831 = vmatpush1.bf16.msra.mxu0 %v811
    %832 = vmatprep.subr.bf16.mxu0 0
    %833 = vmatpush1.bf16.msra.mxu0 %v812
    %834 = vmatprep.subr.bf16.mxu0 0
    %835 = vmatpush1.bf16.msra.mxu0 %v813
    %836 = vmatprep.subr.bf16.mxu0 0
    %837 = vmatpush1.bf16.msra.mxu0 %v814
    %838 = vmatprep.subr.bf16.mxu0 0
    %839 = vmatpush1.bf16.msra.mxu0 %v815
    %840 = vmatprep.subr.bf16.mxu0 0
    %841 = vmatpush1.bf16.msra.mxu0 0
    %842 = vmatprep.subr.bf16.mxu0 0
    %843 = vmatpush1.bf16.msra.mxu0 0
    %844 = vmatprep.subr.bf16.mxu0 0
    %845 = vmatpush1.bf16.msra.mxu0 0
    %846 = vmatprep.subr.bf16.mxu0 0
    %847 = vmatpush1.bf16.msra.mxu0 0
    %848 = vmatprep.subr.bf16.mxu0 0
    %849 = vmatpush1.bf16.msra.mxu0 0
    %850 = vmatprep.subr.bf16.mxu0 0
    %851 = vmatpush1.bf16.msra.mxu0 0
    %852 = vmatprep.subr.bf16.mxu0 0
    %853 = vmatpush1.bf16.msra.mxu0 0
    %854 = vmatprep.subr.bf16.mxu0 0
    %855 = vmatpush1.bf16.msra.mxu0 0
    %856 = vmatprep.mubr.bf16.mxu0 0
    %857 = vmatmul.mubr.bf16.gmra.mrb[0].mxu0 %v506
    %v858 = vpop.f32.mrb[0].mxu0
    %v859 = vadd.f32 %v760, %v858
    %v860 = vpop.f32.mrb[0].mxu0
    %v861 = vpop.f32.mrb[0].mxu0
    %v862 = vadd.f32 %v761, %v861
    %v863 = vpop.f32.mrb[0].mxu0
    %864 = vmatprep.mubr.bf16.mxu0 0
    %865 = vmatmul.mubr.bf16.gmra.mrb[0].mxu0 %v507
    %v866 = vpop.f32.mrb[0].mxu0
    %v867 = vadd.f32 %v762, %v866
    %v868 = vpop.f32.mrb[0].mxu0
    %v869 = vpop.f32.mrb[0].mxu0
    %v870 = vadd.f32 %v763, %v869
    %v871 = vpop.f32.mrb[0].mxu0
    %872 = vdwg.mxu0
    %v873 = vadd.f32 %v859, %v772
    %v874 = vadd.f32 %v862, %v773
    %v875 = vadd.f32 %v867, %v774
    %v876 = vadd.f32 %v870, %v775
    %v877 = vld [vmem:[%s4] sm:$0x1]
    %v879 = vlaneseq
    %v880 = vshrl.u32 %v879, 7
    %v881 = vsub.s32 0, %v880
    %v882 = vrot.slane %v877, %v881
    %v884 = vadd.f32 %v873, %v882
    %v885 = vadd.f32 %v874, %v882
    %v886 = vadd.f32 %v875, %v882
    %v887 = vadd.f32 %v876, %v882
    %v888 = vunpack.c.l.bf16 %v104
    %v889 = vunpack.c.l.bf16 %v105
    %v890 = vunpack.c.l.bf16 %v106
    %v891 = vunpack.c.l.bf16 %v107
    %v892 = vadd.f32 %v884, %v888
    %v893 = vadd.f32 %v885, %v889
    %v894 = vadd.f32 %v886, %v890
    %v895 = vadd.f32 %v887, %v891
    %v896 = vmax.f32 %v892, 0.0
    %v897 = vmax.f32 %v893, 0.0
    %v898 = vmax.f32 %v894, 0.0
    %v899 = vmax.f32 %v895, 0.0
    %900 = vst [vmem:[#allocation8] sm:$0xff] %v896
    %901 = vst [vmem:[#allocation8 + $0x8] sm:$0xff] %v897
    %902 = vst [vmem:[#allocation8 + $0x10] sm:$0xff] %v898
    %903 = vst [vmem:[#allocation8 + $0x18] sm:$0xff] %v899
    // Predicated region
    $region34: #{tpu_custom_call.1} parent=1 // pred_check
      _
    $region35: #{tpu_custom_call.1} parent=1 // pred_check_branch
      %905 = sbr.rel (0) target = $region37
    $region36: #{tpu_custom_call.1} parent=1 // pred_region
      %s907 = ssub.s32 512, 512
      %908 = vsyncadd [#allocation4], %s907
      %s909 = sshll.u32 [#allocation8], 4
      %s910 = int_to_ptr.vmem [resolvable:$true] %s909
      %915 = dma.vmem_to_hbm [thread:$0]  %s910, 512, %s5, [#allocation4], 128, 128, 8
    $region37: #{tpu_custom_call.1} parent=1 // pred_fallthru
      _
    // Predicated region
    $region38: #{tpu_custom_call.1} parent=1 // pred_check
      _
    $region39: #{tpu_custom_call.1} parent=1 // pred_check_branch
      %917 = sbr.rel (0) target = $region41
    $region40: #{tpu_custom_call.1} parent=1 // pred_region
      %918 = dma.done [#allocation4], 512
    $region41: #{tpu_custom_call.1} parent=1 // pred_fallthru
      _
    %919 = vsyncpa [#allocation3], 1
    %920 = vsyncpa [#allocation6], 1
    %921 = vsyncpa [#allocation4], 1

</llo_original>
